<compile_context>
chip_gen: v6e
topology: v6e:2x2x1
jax: 0.10.0
libtpu: 0.0.40
codegen_flags: <defaults>
</compile_context>

<pallas_src>
import functools
import math

import numpy as np
import jax
import jax.numpy as jnp
from jax import lax
from jax.experimental import pallas as pl
from jax.experimental.pallas import tpu as pltpu


# ----------------------------- in-kernel helpers -----------------------------

def _layernorm(x, g, b, eps=1e-5):
    mu = jnp.mean(x, axis=-1, keepdims=True)
    xc = x - mu
    var = jnp.mean(xc * xc, axis=-1, keepdims=True)
    return xc * lax.rsqrt(var + eps) * g + b


_GELU_C = math.sqrt(2.0 / math.pi)


def _gelu_tanh(x):
    # tanh-approx GELU: the transcendental lands on the EUP slot instead of a
    # long exact-erf VPU polynomial (perf review).  Small documented numeric
    # deviation from F.gelu's exact default.
    return 0.5 * x * (1.0 + jnp.tanh(_GELU_C * (x + 0.044715 * x * x * x)))


def _mha_outproj(q, k_ref, v_ref, wo, n_heads, exp_dtype):
    """Multi-head attention fused with a single output projection.

    q      : (T, C) bf16, pre-scaled by 1/sqrt(d_head) (folded into Wq).
    k_ref  : Ref with block (1, n_heads, S, dh) bf16 -- head-major, so the head
             select is a free leading-axis index (no lane-slice copies here).
    v_ref  : Ref with block (1, n_heads, S, dh) bf16.
    wo     : (C, C) bf16.

    Softmax normalization is deferred past P@V (the tiny (T, dh) head output is
    scaled, not the (T, S) probability matrix); exp runs in bf16 on v6e/v7x
    with the row max / row sum kept in f32.  Per-head outputs are concatenated
    and contracted against Wo once (K = C, MXU-friendly).
    """
    t, c = q.shape
    dh = c // n_heads
    outs = []
    # TODO(synk): for SD-scale S on v7x, replace this static unroll with a
    # KV-chunked online softmax (bounds the (T, S) logits temp to (T, TK)) or
    # a fori_loop to bound per-head live ranges.
    for h in range(n_heads):
        q_h = q[:, h * dh:(h + 1) * dh]                            # (T, dh)
        s = lax.dot_general(q_h, k_ref[0, h], (((1,), (1,)), ((), ())),
                            preferred_element_type=jnp.float32)    # (T, S)
        m = jnp.max(s, axis=-1, keepdims=True)
        p = jnp.exp((s - m).astype(exp_dtype))                     # bf16 on v6e/v7x
        l = jnp.sum(p, axis=-1, keepdims=True, dtype=jnp.float32)  # f32 row-sum
        oh = jnp.dot(p.astype(jnp.bfloat16), v_ref[0, h],
                     preferred_element_type=jnp.float32)           # (T, dh)
        outs.append(oh * pl.reciprocal(l))                         # deferred norm
    o = jnp.concatenate(outs, axis=-1).astype(jnp.bfloat16)        # (T, C)
    return jnp.dot(o, wo, preferred_element_type=jnp.float32)


# --------------------------- pass 1: GroupNorm stats --------------------------

def gn_stats_kernel(x_ref, gmap_ref, sum_ref, sq_ref):
    """Accumulate per-group sum / sum-of-squares over HW tiles (grid axis 1)."""
    @pl.when(pl.program_id(1) == 0)
    def _():
        sum_ref[...] = jnp.zeros_like(sum_ref)
        sq_ref[...] = jnp.zeros_like(sq_ref)

    x = x_ref[0]                                           # (TQ, C) f32
    gmap = gmap_ref[...]                                   # (C, G) one-hot
    sum_ref[...] += jnp.dot(jnp.sum(x, axis=0, keepdims=True), gmap,
                            preferred_element_type=jnp.float32)[None]
    sq_ref[...] += jnp.dot(jnp.sum(x * x, axis=0, keepdims=True), gmap,
                           preferred_element_type=jnp.float32)[None]


# ---------------- pass 2 (slim): GN apply + conv_in + LN1 + K/V ---------------

def kv_proj_kernel(n_heads, x_ref, mean_ref, rstd_ref, gn_g_ref, gn_b_ref,
                   cin_w_ref, cin_b_ref, ln1_g_ref, ln1_b_ref,
                   wk_ref, wv_ref, k_ref, v_ref):
    x = x_ref[0]                                           # (TQ, C) f32
    xg = (x - mean_ref[0]) * rstd_ref[0] * gn_g_ref[...] + gn_b_ref[...]
    h = jnp.dot(xg.astype(jnp.bfloat16), cin_w_ref[...],
                preferred_element_type=jnp.float32) + cin_b_ref[...]
    xn = _layernorm(h, ln1_g_ref[...], ln1_b_ref[...]).astype(jnp.bfloat16)
    k = jnp.dot(xn, wk_ref[...],
                preferred_element_type=jnp.float32).astype(jnp.bfloat16)
    v = jnp.dot(xn, wv_ref[...],
                preferred_element_type=jnp.float32).astype(jnp.bfloat16)
    dh = k.shape[-1] // n_heads
    # One-time head split into head-major layout: the lane compaction happens
    # here, once over the data, instead of per (query tile x head) in pass 3.
    for hd in range(n_heads):
        sl = slice(hd * dh, (hd + 1) * dh)
        k_ref[0, hd] = k[:, sl]
        v_ref[0, hd] = v[:, sl]


# ---------- pass 3: (recompute h, q) + self/cross attn + GeGLU + conv_out -----

def attn_ffn_kernel(n_heads, exp_dtype,
                    x0_ref, mean_ref, rstd_ref, gn_g_ref, gn_b_ref,
                    cin_w_ref, cin_b_ref, ln1_g_ref, ln1_b_ref, sa_wq_ref,
                    k_ref, v_ref, sa_wo_ref, sa_bo_ref,
                    ln2_g_ref, ln2_b_ref, ca_wq_ref, k2_ref, v2_ref,
                    ca_wo_ref, ca_bo_ref,
                    ln3_g_ref, ln3_b_ref,
                    g1h_w_ref, g1h_b_ref, g1g_w_ref, g1g_b_ref,
                    g2_w_ref, g2_b_ref, cout_w_ref, cout_b_ref,
                    o_ref):
    x0 = x0_ref[0]                                         # (TQ, C) f32

    # Recompute GN-apply + conv_input (1x1) + LN1 + Q for this query tile:
    # two extra (TQ,C)x(C,C) matmuls + LN instead of the HBM round trip of
    # h (f32) and q (bf16) between passes.
    xg = (x0 - mean_ref[0]) * rstd_ref[0] * gn_g_ref[...] + gn_b_ref[...]
    h = jnp.dot(xg.astype(jnp.bfloat16), cin_w_ref[...],
                preferred_element_type=jnp.float32) + cin_b_ref[...]
    xn = _layernorm(h, ln1_g_ref[...], ln1_b_ref[...]).astype(jnp.bfloat16)
    q = jnp.dot(xn, sa_wq_ref[...],                        # Wq pre-scaled
                preferred_element_type=jnp.float32).astype(jnp.bfloat16)

    # --- SelfAttention against per-batch resident, head-major K/V + residual
    x = _mha_outproj(q, k_ref, v_ref, sa_wo_ref[...], n_heads, exp_dtype)
    x = x + sa_bo_ref[...] + h

    # --- LayerNorm2 + CrossAttention (K2/V2 hoisted, one compute per batch)
    res = x
    xn = _layernorm(x, ln2_g_ref[...], ln2_b_ref[...]).astype(jnp.bfloat16)
    q2 = jnp.dot(xn, ca_wq_ref[...],                       # Wq pre-scaled
                 preferred_element_type=jnp.float32).astype(jnp.bfloat16)
    x = _mha_outproj(q2, k2_ref, v2_ref, ca_wo_ref[...], n_heads, exp_dtype)
    x = x + ca_bo_ref[...] + res

    # --- LayerNorm3 + GeGLU FFN (+ residual); split weights -> no (TQ,8C) temp
    res = x
    xn = _layernorm(x, ln3_g_ref[...], ln3_b_ref[...]).astype(jnp.bfloat16)
    hh = jnp.dot(xn, g1h_w_ref[...],
                 preferred_element_type=jnp.float32) + g1h_b_ref[...]
    gg = jnp.dot(xn, g1g_w_ref[...],
                 preferred_element_type=jnp.float32) + g1g_b_ref[...]
    ff = (hh * _gelu_tanh(gg)).astype(jnp.bfloat16)
    x = jnp.dot(ff, g2_w_ref[...],
                preferred_element_type=jnp.float32) + g2_b_ref[...] + res

    # --- conv_output (1x1) + long residual (kept f32)
    o_ref[0] = (jnp.dot(x.astype(jnp.bfloat16), cout_w_ref[...],
                        preferred_element_type=jnp.float32)
                + cout_b_ref[...] + x0)


# --------------------------------- wrapper -----------------------------------

def _device_kind():
    try:
        return jax.devices()[0].device_kind.lower()
    except Exception:
        return ""


def _vmem_capacity_bytes():
    try:
        info = pltpu.get_tpu_info()
        cap = getattr(info, "vmem_capacity_bytes", None)
        if cap:
            return int(cap)
    except Exception:
        pass
    # Fallback: v7x has 64 MiB per TensorCore, earlier gens 128 MiB.
    return (64 if "v7" in _device_kind() else 128) * 1024 * 1024


def _prepare_params(params, n_heads):
    """Split fused weights, fold 1/sqrt(d_head) into Wq, cast matmul weights to bf16."""
    P = params
    C = P["cin_w"].shape[0]
    dh = C // n_heads
    scale = 1.0 / math.sqrt(dh)
    bf = lambda a: a.astype(jnp.bfloat16)
    return {
        "gn_g": P["gn_g"], "gn_b": P["gn_b"],
        "cin_w": bf(P["cin_w"]), "cin_b": P["cin_b"],
        "ln1_g": P["ln1_g"], "ln1_b": P["ln1_b"],
        "sa_wq": bf(P["sa_wqkv"][:, :C] * scale),
        "sa_wk": bf(P["sa_wqkv"][:, C:2 * C]),
        "sa_wv": bf(P["sa_wqkv"][:, 2 * C:]),
        "sa_wo": bf(P["sa_wo"]), "sa_bo": P["sa_bo"],
        "ln2_g": P["ln2_g"], "ln2_b": P["ln2_b"],
        "ca_wq": bf(P["ca_wq"] * scale),
        "ca_wk": bf(P["ca_wk"]), "ca_wv": bf(P["ca_wv"]),
        "ca_wo": bf(P["ca_wo"]), "ca_bo": P["ca_bo"],
        "ln3_g": P["ln3_g"], "ln3_b": P["ln3_b"],
        "g1h_w": bf(P["g1_w"][:, :4 * C]), "g1h_b": P["g1_b"][:, :4 * C],
        "g1g_w": bf(P["g1_w"][:, 4 * C:]), "g1g_b": P["g1_b"][:, 4 * C:],
        "g2_w": bf(P["g2_w"]), "g2_b": P["g2_b"],
        "cout_w": bf(P["cout_w"]), "cout_b": P["cout_b"],
    }


def unet_attention_block(x_nchw, context, params, n_heads, n_groups=32):
    N, C, H, W = x_nchw.shape
    HW = H * W
    Sc = context.shape[1]
    dh = C // n_heads
    assert C % n_groups == 0 and C % n_heads == 0

    # TODO(synk): the NCHW<->(N,HW,C) transposes are extra HBM round trips;
    # express them through the BlockSpecs (or hand (N,HW,C) to the consumer)
    # if this block is memory-bound end to end.
    x_seq = jnp.transpose(x_nchw.reshape(N, C, HW), (0, 2, 1))  # (N, HW, C) f32
    P = _prepare_params(params, n_heads)

    # ---- hardware-adaptive sizing -------------------------------------------
    vmem_cap = _vmem_capacity_bytes()
    vmem_limit = max(32 * 1024 * 1024, int(vmem_cap * 0.85))  # headroom for scratch
    kind = _device_kind()
    # bf16 exp on the EUP only where VPU/EUP are bf16-capable (v6e / v7x).
    exp_dtype = jnp.bfloat16 if ("v6" in kind or "v7" in kind) else jnp.float32
    # Query-tile size over HW: largest that fits; smaller on 64 MiB-VMEM parts.
    tq_cands = (512, 256, 128) if vmem_cap >= 96 * 1024 * 1024 else (256, 128)
    TQ = HW
    for cand in tq_cands:
        if HW % cand == 0:
            TQ = cand
            break
    T = HW // TQ

    def tile_spec():
        return pl.BlockSpec((1, TQ, C), lambda b, t: (b, t, 0))

    def batch_spec(arr):
        shape = (1,) + arr.shape[1:]
        nd = len(shape)
        return pl.BlockSpec(shape, lambda b, t, _n=nd: (b,) + (0,) * (_n - 1))

    # TODO(synk): single-buffer these grid-invariant weight blocks
    # (pipeline_mode=pl.Buffered(1)) once the installed JAX top-level TPU
    # pipeliner is confirmed to accept buffer_count=1; the constant index_map
    # already avoids re-DMA, this only trims the 2x VMEM reservation.
    def const_spec(arr):
        nd = arr.ndim
        return pl.BlockSpec(arr.shape, lambda b, t, _n=nd: (0,) * _n)

    cparams = pltpu.CompilerParams(
        dimension_semantics=("parallel", "parallel"),
        vmem_limit_bytes=vmem_limit)
    stats_cparams = pltpu.CompilerParams(
        dimension_semantics=("parallel", "arbitrary"),
        vmem_limit_bytes=vmem_limit)

    # ---- pass 1: GroupNorm group statistics (accumulated over HW tiles) -----
    gids = np.arange(C) // (C // n_groups)
    gmap = jnp.asarray(
        (gids[:, None] == np.arange(n_groups)[None, :]).astype(np.float32))
    sum_g, sq_g = pl.pallas_call(
        gn_stats_kernel,
        out_shape=(jax.ShapeDtypeStruct((N, 1, n_groups), jnp.float32),
                   jax.ShapeDtypeStruct((N, 1, n_groups), jnp.float32)),
        grid_spec=pltpu.PrefetchScalarGridSpec(
            num_scalar_prefetch=0,
            grid=(N, T),
            in_specs=[tile_spec(), const_spec(gmap)],
            out_specs=(pl.BlockSpec((1, 1, n_groups), lambda b, t: (b, 0, 0)),
                       pl.BlockSpec((1, 1, n_groups), lambda b, t: (b, 0, 0))),
        ),
        compiler_params=stats_cparams,
    )(x_seq, gmap)

    cnt = float(HW * (C // n_groups))
    mean_g = sum_g[:, 0, :] / cnt
    # TODO(synk): one-pass E[x^2]-E[x]^2 in f32; switch to a shifted two-pass if
    # activations get a large mean or are quantized.
    var_g = jnp.maximum(sq_g[:, 0, :] / cnt - mean_g * mean_g, 0.0)
    rstd_g = lax.rsqrt(var_g + 1e-6)
    rep = C // n_groups
    mean_c = jnp.repeat(mean_g, rep, axis=-1)[:, None, :]    # (N, 1, C)
    rstd_c = jnp.repeat(rstd_g, rep, axis=-1)[:, None, :]

    # ---- hoisted cross-attention K2/V2 (once per batch, tiny) ----------------
    ctx_bf = context.astype(jnp.bfloat16)
    k2 = jnp.einsum("nsd,dc->nsc", ctx_bf, P["ca_wk"],
                    preferred_element_type=jnp.float32)
    v2 = jnp.einsum("nsd,dc->nsc", ctx_bf, P["ca_wv"],
                    preferred_element_type=jnp.float32)
    k2h = k2.reshape(N, Sc, n_heads, dh).transpose(0, 2, 1, 3).astype(jnp.bfloat16)
    v2h = v2.reshape(N, Sc, n_heads, dh).transpose(0, 2, 1, 3).astype(jnp.bfloat16)

    # ---- pass 2 (slim): GN apply + conv_input + LN1 + head-major K/V --------
    kv_pairs = [
        (x_seq, tile_spec()),
        (mean_c, batch_spec(mean_c)), (rstd_c, batch_spec(rstd_c)),
        (P["gn_g"], const_spec(P["gn_g"])), (P["gn_b"], const_spec(P["gn_b"])),
        (P["cin_w"], const_spec(P["cin_w"])), (P["cin_b"], const_spec(P["cin_b"])),
        (P["ln1_g"], const_spec(P["ln1_g"])), (P["ln1_b"], const_spec(P["ln1_b"])),
        (P["sa_wk"], const_spec(P["sa_wk"])), (P["sa_wv"], const_spec(P["sa_wv"])),
    ]
    kv_out_spec = pl.BlockSpec((1, n_heads, TQ, dh), lambda b, t: (b, 0, t, 0))
    k_sa, v_sa = pl.pallas_call(
        functools.partial(kv_proj_kernel, n_heads),
        out_shape=(jax.ShapeDtypeStruct((N, n_heads, HW, dh), jnp.bfloat16),
                   jax.ShapeDtypeStruct((N, n_heads, HW, dh), jnp.bfloat16)),
        grid_spec=pltpu.PrefetchScalarGridSpec(
            num_scalar_prefetch=0,
            grid=(N, T),
            in_specs=[s for _, s in kv_pairs],
            out_specs=(kv_out_spec, kv_out_spec),
        ),
        compiler_params=cparams,
    )(*[a for a, _ in kv_pairs])

    # ---- pass 3: attention + cross-attention + GeGLU + conv_out -------------
    main_pairs = [
        (x_seq, tile_spec()),
        (mean_c, batch_spec(mean_c)), (rstd_c, batch_spec(rstd_c)),
        (P["gn_g"], const_spec(P["gn_g"])), (P["gn_b"], const_spec(P["gn_b"])),
        (P["cin_w"], const_spec(P["cin_w"])), (P["cin_b"], const_spec(P["cin_b"])),
        (P["ln1_g"], const_spec(P["ln1_g"])), (P["ln1_b"], const_spec(P["ln1_b"])),
        (P["sa_wq"], const_spec(P["sa_wq"])),
        (k_sa, batch_spec(k_sa)), (v_sa, batch_spec(v_sa)),
        (P["sa_wo"], const_spec(P["sa_wo"])), (P["sa_bo"], const_spec(P["sa_bo"])),
        (P["ln2_g"], const_spec(P["ln2_g"])), (P["ln2_b"], const_spec(P["ln2_b"])),
        (P["ca_wq"], const_spec(P["ca_wq"])),
        (k2h, batch_spec(k2h)), (v2h, batch_spec(v2h)),
        (P["ca_wo"], const_spec(P["ca_wo"])), (P["ca_bo"], const_spec(P["ca_bo"])),
        (P["ln3_g"], const_spec(P["ln3_g"])), (P["ln3_b"], const_spec(P["ln3_b"])),
        (P["g1h_w"], const_spec(P["g1h_w"])), (P["g1h_b"], const_spec(P["g1h_b"])),
        (P["g1g_w"], const_spec(P["g1g_w"])), (P["g1g_b"], const_spec(P["g1g_b"])),
        (P["g2_w"], const_spec(P["g2_w"])), (P["g2_b"], const_spec(P["g2_b"])),
        (P["cout_w"], const_spec(P["cout_w"])), (P["cout_b"], const_spec(P["cout_b"])),
    ]
    out = pl.pallas_call(
        functools.partial(attn_ffn_kernel, n_heads, exp_dtype),
        out_shape=jax.ShapeDtypeStruct((N, HW, C), jnp.float32),
        grid_spec=pltpu.PrefetchScalarGridSpec(
            num_scalar_prefetch=0,
            grid=(N, T),
            in_specs=[s for _, s in main_pairs],
            out_specs=tile_spec(),
        ),
        compiler_params=cparams,
    )(*[a for a, _ in main_pairs])

    return jnp.transpose(out, (0, 2, 1)).reshape(N, C, H, W)


# ------------------------------ reference (JAX, f32) ---------------------------

def reference(x_nchw, context, P, n_heads, n_groups=32):
    N, C, H, W = x_nchw.shape
    HW = H * W
    x0 = jnp.transpose(x_nchw.reshape(N, C, HW), (0, 2, 1))  # (N, HW, C)

    cg = C // n_groups
    xg = x0.reshape(N, HW, n_groups, cg)
    mu = xg.mean(axis=(1, 3), keepdims=True)
    var = ((xg - mu) ** 2).mean(axis=(1, 3), keepdims=True)
    x = ((xg - mu) / jnp.sqrt(var + 1e-6)).reshape(N, HW, C)
    x = x * P["gn_g"] + P["gn_b"]
    x = x @ P["cin_w"] + P["cin_b"]

    def ln(t, g, b, eps=1e-5):
        m = t.mean(-1, keepdims=True)
        v = ((t - m) ** 2).mean(-1, keepdims=True)
        return (t - m) / jnp.sqrt(v + eps) * g + b

    def mha(q, k, v, nh):
        B, Tq, Cd = q.shape
        dh = Cd // nh
        qh = q.reshape(B, Tq, nh, dh).transpose(0, 2, 1, 3)
        kh = k.reshape(B, -1, nh, dh).transpose(0, 2, 1, 3)
        vh = v.reshape(B, -1, nh, dh).transpose(0, 2, 1, 3)
        s = jnp.einsum("bhqd,bhkd->bhqk", qh, kh) / math.sqrt(dh)
        p = jax.nn.softmax(s, axis=-1)
        o = jnp.einsum("bhqk,bhkd->bhqd", p, vh)
        return o.transpose(0, 2, 1, 3).reshape(B, Tq, Cd)

    res = x
    xn = ln(x, P["ln1_g"], P["ln1_b"])
    q, k, v = jnp.split(xn @ P["sa_wqkv"], 3, axis=-1)
    x = mha(q, k, v, n_heads) @ P["sa_wo"] + P["sa_bo"] + res

    res = x
    xn = ln(x, P["ln2_g"], P["ln2_b"])
    q = xn @ P["ca_wq"]
    k = context @ P["ca_wk"]
    v = context @ P["ca_wv"]
    x = mha(q, k, v, n_heads) @ P["ca_wo"] + P["ca_bo"] + res

    res = x
    xn = ln(x, P["ln3_g"], P["ln3_b"])
    hg = xn @ P["g1_w"] + P["g1_b"]
    hh, gate = jnp.split(hg, 2, axis=-1)
    gelu = 0.5 * gate * (1.0 + lax.erf(gate / math.sqrt(2.0)))  # exact F.gelu
    x = (hh * gelu) @ P["g2_w"] + P["g2_b"] + res

    x = x @ P["cout_w"] + P["cout_b"] + x0
    return jnp.transpose(x, (0, 2, 1)).reshape(N, C, H, W)


# ------------------------------- param init -----------------------------------

def init_params(key, C, Dc):
    keys = iter(jax.random.split(key, 32))

    def w(fin, fout):
        return jax.random.normal(next(keys), (fin, fout), jnp.float32) / math.sqrt(fin)

    def b(fout):
        return 0.1 * jax.random.normal(next(keys), (1, fout), jnp.float32)

    def affine(fout):  # norm gamma/beta
        g = 1.0 + 0.1 * jax.random.normal(next(keys), (1, fout), jnp.float32)
        bb = 0.1 * jax.random.normal(next(keys), (1, fout), jnp.float32)
        return g, bb

    gn_g, gn_b = affine(C)
    ln1_g, ln1_b = affine(C)
    ln2_g, ln2_b = affine(C)
    ln3_g, ln3_b = affine(C)
    return {
        "gn_g": gn_g, "gn_b": gn_b,
        "cin_w": w(C, C), "cin_b": b(C),
        "ln1_g": ln1_g, "ln1_b": ln1_b,
        "sa_wqkv": w(C, 3 * C),            # in_proj_bias=False
        "sa_wo": w(C, C), "sa_bo": b(C),
        "ln2_g": ln2_g, "ln2_b": ln2_b,
        "ca_wq": w(C, C), "ca_wk": w(Dc, C), "ca_wv": w(Dc, C),  # no bias
        "ca_wo": w(C, C), "ca_bo": b(C),
        "ln3_g": ln3_g, "ln3_b": ln3_b,
        "g1_w": w(C, 8 * C), "g1_b": b(8 * C),
        "g2_w": w(4 * C, C), "g2_b": b(C),
        "cout_w": w(C, C), "cout_b": b(C),
    }


# ----------------------------------- main --------------------------------------

if __name__ == "__main__":
    n_head, n_embd = 4, 32           # channels = 128 (lane-dense, 32 groups of 4)
    channels = n_head * n_embd
    n_groups = 32
    N, H, W = 2, 16, 16              # HW = 256
    seq_ctx, d_context = 16, 64

    key = jax.random.PRNGKey(0)
    kx, kc, kp = jax.random.split(key, 3)
    x = jax.random.normal(kx, (N, channels, H, W), jnp.float32)
    ctx = jax.random.normal(kc, (N, seq_ctx, d_context), jnp.float32)
    params = init_params(kp, channels, d_context)

    out = jax.block_until_ready(
        unet_attention_block(x, ctx, params, n_head, n_groups))

    ref = jax.block_until_ready(reference(x, ctx, params, n_head, n_groups))
    # bf16 matmul operands / bf16 exp (f32 accumulation & stats) + tanh-approx
    # GELU vs an exact f32 reference -> relaxed tolerance.
    np.testing.assert_allclose(np.asarray(out), np.asarray(ref),
                               rtol=5e-2, atol=1.5e-1)
    print("KERNEL_OK")
</pallas_src>

<mosaic_0001>
module attributes {stable_mosaic.version = 11 : i64} {
  func.func @gn_stats_kernel(%arg0: i32, %arg1: i32, %arg2: memref<1x256x128xf32, #tpu.memory_space<vmem>>, %arg3: memref<128x32xf32, #tpu.memory_space<vmem>>, %arg4: memref<1x1x32xf32, #tpu.memory_space<vmem>>, %arg5: memref<1x1x32xf32, #tpu.memory_space<vmem>>) attributes {dimension_semantics = [#tpu.dimension_semantics<parallel>, #tpu.dimension_semantics<arbitrary>], iteration_bounds = array<i64: 2, 1>, scalar_prefetch = 0 : i64, scratch_operands = 0 : i64, tpu.core_type = #tpu.core_type<tc>, window_params = [{transform_indices = @transform_0, window_bounds = array<i64: 1, 256, 128>}, {pipeline_mode = #tpu.pipeline_mode<synchronous>, transform_indices = @transform_1, window_bounds = array<i64: 128, 32>}, {transform_indices = @transform_2, window_bounds = array<i64: 1, 1, 32>}, {transform_indices = @transform_3, window_bounds = array<i64: 1, 1, 32>}]} {
    %c0_i32 = arith.constant 0 : i32
    %0 = arith.cmpi eq, %arg1, %c0_i32 : i32
    %1 = arith.extui %0 : i1 to i32
    %c0_i32_0 = arith.constant 0 : i32
    %2 = arith.cmpi ne, %1, %c0_i32_0 : i32
    scf.if %2 {
      %cst_20 = arith.constant 0.000000e+00 : f32
      %21 = vector.broadcast %cst_20 : f32 to vector<1x1x32xf32>
      %c0_21 = arith.constant 0 : index
      %c0_22 = arith.constant 0 : index
      %c0_23 = arith.constant 0 : index
      %22 = vector.load %arg4[%c0_21, %c0_22, %c0_23] : memref<1x1x32xf32, #tpu.memory_space<vmem>>, vector<1x1x32xf32>
      tpu.vector_store %arg4[%c0_21, %c0_22, %c0_23], %21 {strides = array<i32>} : memref<1x1x32xf32, #tpu.memory_space<vmem>>, vector<1x1x32xf32>,
      %cst_24 = arith.constant 0.000000e+00 : f32
      %23 = vector.broadcast %cst_24 : f32 to vector<1x1x32xf32>
      %c0_25 = arith.constant 0 : index
      %c0_26 = arith.constant 0 : index
      %c0_27 = arith.constant 0 : index
      %24 = vector.load %arg5[%c0_25, %c0_26, %c0_27] : memref<1x1x32xf32, #tpu.memory_space<vmem>>, vector<1x1x32xf32>
      tpu.vector_store %arg5[%c0_25, %c0_26, %c0_27], %23 {strides = array<i32>} : memref<1x1x32xf32, #tpu.memory_space<vmem>>, vector<1x1x32xf32>,
    } else {
    }
    %c0 = arith.constant 0 : index
    %c0_1 = arith.constant 0 : index
    %c0_2 = arith.constant 0 : index
    %3 = vector.load %arg2[%c0, %c0_1, %c0_2] : memref<1x256x128xf32, #tpu.memory_space<vmem>>, vector<1x256x128xf32>
    %4 = vector.shape_cast %3 : vector<1x256x128xf32> to vector<256x128xf32>
    %c0_3 = arith.constant 0 : index
    %c0_4 = arith.constant 0 : index
    %5 = vector.load %arg3[%c0_3, %c0_4] : memref<128x32xf32, #tpu.memory_space<vmem>>, vector<128x32xf32>
    %c0_5 = arith.constant 0 : index
    %c0_6 = arith.constant 0 : index
    %c0_7 = arith.constant 0 : index
    %6 = vector.load %arg4[%c0_5, %c0_6, %c0_7] : memref<1x1x32xf32, #tpu.memory_space<vmem>>, vector<1x1x32xf32>
    %cst = arith.constant dense<0.000000e+00> : vector<128xf32>
    %7 = vector.multi_reduction <add>, %4, %cst [0] : vector<256x128xf32> to vector<128xf32>
    %8 = vector.shape_cast %7 : vector<128xf32> to vector<1x128xf32>
    %cst_8 = arith.constant dense<0.000000e+00> : vector<1x32xf32>
    %9 = tpu.matmul %8, %5, %cst_8 {dimension_numbers = #tpu.dot_dimension_numbers<[1], [0], [0], [1], [0, 0, 1, 1], [], []>} : vector<1x128xf32>, vector<128x32xf32>, vector<1x32xf32> -> vector<1x32xf32>
    %10 = vector.shape_cast %9 : vector<1x32xf32> to vector<1x1x32xf32>
    %11 = arith.addf %6, %10 : vector<1x1x32xf32>
    %c0_9 = arith.constant 0 : index
    %c0_10 = arith.constant 0 : index
    %c0_11 = arith.constant 0 : index
    %12 = vector.load %arg4[%c0_9, %c0_10, %c0_11] : memref<1x1x32xf32, #tpu.memory_space<vmem>>, vector<1x1x32xf32>
    tpu.vector_store %arg4[%c0_9, %c0_10, %c0_11], %11 {strides = array<i32>} : memref<1x1x32xf32, #tpu.memory_space<vmem>>, vector<1x1x32xf32>,
    %c0_12 = arith.constant 0 : index
    %c0_13 = arith.constant 0 : index
    %c0_14 = arith.constant 0 : index
    %13 = vector.load %arg5[%c0_12, %c0_13, %c0_14] : memref<1x1x32xf32, #tpu.memory_space<vmem>>, vector<1x1x32xf32>
    %14 = arith.mulf %4, %4 : vector<256x128xf32>
    %cst_15 = arith.constant dense<0.000000e+00> : vector<128xf32>
    %15 = vector.multi_reduction <add>, %14, %cst_15 [0] : vector<256x128xf32> to vector<128xf32>
    %16 = vector.shape_cast %15 : vector<128xf32> to vector<1x128xf32>
    %cst_16 = arith.constant dense<0.000000e+00> : vector<1x32xf32>
    %17 = tpu.matmul %16, %5, %cst_16 {dimension_numbers = #tpu.dot_dimension_numbers<[1], [0], [0], [1], [0, 0, 1, 1], [], []>} : vector<1x128xf32>, vector<128x32xf32>, vector<1x32xf32> -> vector<1x32xf32>
    %18 = vector.shape_cast %17 : vector<1x32xf32> to vector<1x1x32xf32>
    %19 = arith.addf %13, %18 : vector<1x1x32xf32>
    %c0_17 = arith.constant 0 : index
    %c0_18 = arith.constant 0 : index
    %c0_19 = arith.constant 0 : index
    %20 = vector.load %arg5[%c0_17, %c0_18, %c0_19] : memref<1x1x32xf32, #tpu.memory_space<vmem>>, vector<1x1x32xf32>
    tpu.vector_store %arg5[%c0_17, %c0_18, %c0_19], %19 {strides = array<i32>} : memref<1x1x32xf32, #tpu.memory_space<vmem>>, vector<1x1x32xf32>,
    return
  }
  func.func @transform_0(%arg0: i32, %arg1: i32) -> (i32, i32, i32) {
    %c0_i32 = arith.constant 0 : i32
    %c0_i32_0 = arith.constant 0 : i32
    return %arg0, %arg1, %c0_i32 : i32, i32, i32
  }
  func.func @transform_1(%arg0: i32, %arg1: i32) -> (i32, i32) {
    %c0_i32 = arith.constant 0 : i32
    %c0_i32_0 = arith.constant 0 : i32
    %c0_i32_1 = arith.constant 0 : i32
    return %c0_i32, %c0_i32_0 : i32, i32
  }
  func.func @transform_2(%arg0: i32, %arg1: i32) -> (i32, i32, i32) {
    %c0_i32 = arith.constant 0 : i32
    %c0_i32_0 = arith.constant 0 : i32
    %c0_i32_1 = arith.constant 0 : i32
    return %arg0, %c0_i32, %c0_i32_0 : i32, i32, i32
  }
  func.func @transform_3(%arg0: i32, %arg1: i32) -> (i32, i32, i32) {
    %c0_i32 = arith.constant 0 : i32
    %c0_i32_0 = arith.constant 0 : i32
    %c0_i32_1 = arith.constant 0 : i32
    return %arg0, %c0_i32, %c0_i32_0 : i32, i32, i32
  }
}

</mosaic_0001>

<llo_original>
// kernel: tpu_custom_call.1
$region0: #{tpu_custom_call.1}
  #allocation0 [shape = 'u32[]', space=smem, size = 0x4, offset = 0x4, fixed_abs, tag = 'smem constant byte address 0x4 - core index']
  #allocation1 [shape = 'u32[144,128]{1,0:T(1,128)}', space=vmem, size = 0x12000, scoped, tag = 'internal scratch']
  %s0 = inlined_call_operand.hbm [shape: f32[2,256,128], index: 0, kind: input, shape index: {}]
  %s1 = inlined_call_operand.vmem [shape: f32[128,32], index: 1, kind: input, shape index: {}]
  %s2 = inlined_call_operand.hbm [shape: f32[2,1,32], index: 2, kind: output, shape index: {0}]
  %s3 = inlined_call_operand.hbm [shape: f32[2,1,32], index: 3, kind: output, shape index: {1}]
  %4 = xla_tuple %s2, %s3
  %s5 = sld [smem:[#allocation0]]
  $region57: #{tpu_custom_call.1} parent=0
    _
  %s7 = ssub.s32 1, %s5
  %s8 = scalar_select 0, %s7, %s5
  $region1: #{tpu_custom_call.1} parent=0
    #allocation2 [shape = 'u8[262144]{0}', space=vmem, size = 0x40000, scoped, tag = 'input window, operand 0']
    #allocation3 [shape = 's32[2]{0}', space=sflag, size = 0x8, scoped, tag = 'scoped memory for tpu_custom_call.1']
    #allocation4 [shape = 's32[2]{0}', space=sflag, size = 0x8, scoped, tag = 'scoped memory for tpu_custom_call.1']
    #allocation5 [shape = 'u8[1024]{0}', space=vmem, size = 0x400, scoped, tag = 'output window, operand 0']
    #allocation6 [shape = 'u8[1024]{0}', space=vmem, size = 0x400, scoped, tag = 'output window, operand 1']
    #allocation7 [shape = 's32[2]{0}', space=sflag, size = 0x8, scoped, tag = 'scoped memory for tpu_custom_call.1']
    %9 = vsyncpa [#allocation3], 0
    %s10 = scalar_lea.sflag [#allocation3], 1
    %11 = vsyncpa %s10, 0
    %12 = vsyncpa [#allocation4], 0
    %s13 = scalar_lea.sflag [#allocation4], 1
    %14 = vsyncpa %s13, 0
    %15 = vsyncpa [#allocation7], 0
    %s16 = scalar_lea.sflag [#allocation7], 1
    %17 = vsyncpa %s16, 0
    loop: start=0, step=1, limit=4
    $region2: #{tpu_custom_call.1} parent=1 // loop_pre_header
      _
    $region3: #{tpu_custom_call.1} parent=1 // loop_header
      %s19 = sphi 0, %s23
      %p20 = scmp.ge.s32.totalorder %s19, 4
      %s26 = sphi 0, %s38
      %s27 = sphi 0, %s34
      %s28 = sphi 0, %s26
      %s29 = sphi 0, %s27
      %s30 = sphi 0, %s28
      %s31 = sphi 0, %s29
      %s43 = sphi 0, %s45
      %s46 = sphi 0, %s43
      %s47 = sphi 0, %s46
      %s63 = sphi 0, %s47
      %s67 = sphi 0, %s67
      %s69 = sphi 0, %s67
      %s70 = sphi 0, %s69
      %s84 = sphi 0, %s70
      %s90 = sphi 0, %s92
      %s93 = sphi 0, %s90
      %s94 = sphi 0, %s93
      %s110 = sphi 0, %s94
      %s116 = sphi 0, %s118
      %s119 = sphi 0, %s116
      %s120 = sphi 0, %s119
      %s136 = sphi 0, %s120
    $region4: #{tpu_custom_call.1} parent=1 // loop_header_branch
      %22 = sbr.rel (%p20) target = $region8
    $region5: #{tpu_custom_call.1} parent=1 // loop_body
      %s24 = ssub.s32 %s19, 1
      %s25 = ssub.s32 %s19, 2
      %s32 = sadd.s32 1, %s27
      %p33 = scmp.ge.s32.totalorder %s32, 1
      %s34 = scalar_select %p33, 0, %s32
      %s35 = sadd.s32 1, %s26
      %s36 = scalar_select %p33, %s35, %s26
      %p37 = scmp.ge.s32.totalorder %s36, 2
      %s38 = scalar_select %p37, 0, %s36
      %s39 = ssub.s32 %s26, %s38
      %s40 = ssub.s32 %s27, %s34
      %s41 = sor.u32 %s39, %s40
      %p42 = scmp.eq.s32.totalorder %s41, 0
      %s44 = sadd.s32 %s43, 1
      %s45 = scalar_select %p42, %s43, %s44
      %p48 = pneg %p42
      %p49 = scmp.eq.s32.totalorder %s19, 1
      %p50 = por %p48, %p49
      %p51 = scmp.ne.s32.totalorder %s43, %s46
      %p52 = scmp.eq.s32.totalorder %s19, 0
      %p53 = por %p51, %p52
      %p54 = scmp.ne.s32.totalorder %s43, %s46
      %p55 = scmp.eq.s32.totalorder %s24, 1
      %p56 = por %p54, %p55
      %p57 = scmp.ne.s32.totalorder %s46, %s47
      %p58 = scmp.eq.s32.totalorder %s24, 0
      %p59 = por %p57, %p58
      %p60 = scmp.ne.s32.totalorder %s46, %s47
      %p61 = scmp.eq.s32.totalorder %s25, 1
      %p62 = por %p60, %p61
      %p64 = scmp.ne.s32.totalorder %s47, %s63
      %p65 = scmp.eq.s32.totalorder %s25, 0
      %p66 = por %p64, %p65
      %s68 = sadd.s32 %s67, 1
      %p71 = scmp.eq.s32.totalorder %s19, 1
      %p72 = scmp.ne.s32.totalorder %s67, %s69
      %p73 = scmp.eq.s32.totalorder %s19, 0
      %p74 = por %p72, %p73
      %p75 = scmp.ne.s32.totalorder %s67, %s69
      %p76 = scmp.eq.s32.totalorder %s24, 1
      %p77 = por %p75, %p76
      %p78 = scmp.ne.s32.totalorder %s69, %s70
      %p79 = scmp.eq.s32.totalorder %s24, 0
      %p80 = por %p78, %p79
      %p81 = scmp.ne.s32.totalorder %s69, %s70
      %p82 = scmp.eq.s32.totalorder %s25, 1
      %p83 = por %p81, %p82
      %p85 = scmp.ne.s32.totalorder %s70, %s84
      %p86 = scmp.eq.s32.totalorder %s25, 0
      %p87 = por %p85, %p86
      %s88 = ssub.s32 %s26, %s38
      %p89 = scmp.eq.s32.totalorder %s88, 0
      %s91 = sadd.s32 %s90, 1
      %s92 = scalar_select %p89, %s90, %s91
      %p95 = pneg %p89
      %p96 = scmp.eq.s32.totalorder %s19, 1
      %p97 = por %p95, %p96
      %p98 = scmp.ne.s32.totalorder %s90, %s93
      %p99 = scmp.eq.s32.totalorder %s19, 0
      %p100 = por %p98, %p99
      %p101 = scmp.ne.s32.totalorder %s90, %s93
      %p102 = scmp.eq.s32.totalorder %s24, 1
      %p103 = por %p101, %p102
      %p104 = scmp.ne.s32.totalorder %s93, %s94
      %p105 = scmp.eq.s32.totalorder %s24, 0
      %p106 = por %p104, %p105
      %p107 = scmp.ne.s32.totalorder %s93, %s94
      %p108 = scmp.eq.s32.totalorder %s25, 1
      %p109 = por %p107, %p108
      %p111 = scmp.ne.s32.totalorder %s94, %s110
      %p112 = scmp.eq.s32.totalorder %s25, 0
      %p113 = por %p111, %p112
      %s114 = ssub.s32 %s26, %s38
      %p115 = scmp.eq.s32.totalorder %s114, 0
      %s117 = sadd.s32 %s116, 1
      %s118 = scalar_select %p115, %s116, %s117
      %p121 = pneg %p115
      %p122 = scmp.eq.s32.totalorder %s19, 1
      %p123 = por %p121, %p122
      %p124 = scmp.ne.s32.totalorder %s116, %s119
      %p125 = scmp.eq.s32.totalorder %s19, 0
      %p126 = por %p124, %p125
      %p127 = scmp.ne.s32.totalorder %s116, %s119
      %p128 = scmp.eq.s32.totalorder %s24, 1
      %p129 = por %p127, %p128
      %p130 = scmp.ne.s32.totalorder %s119, %s120
      %p131 = scmp.eq.s32.totalorder %s24, 0
      %p132 = por %p130, %p131
      %p133 = scmp.ne.s32.totalorder %s119, %s120
      %p134 = scmp.eq.s32.totalorder %s25, 1
      %p135 = por %p133, %p134
      %p137 = scmp.ne.s32.totalorder %s120, %s136
      %p138 = scmp.eq.s32.totalorder %s25, 0
      %p139 = por %p137, %p138
      %p140 = scmp.le.s32.totalorder 1, %s19
      %p141 = scmp.lt.s32.totalorder %s19, 3
      %p142 = pnand %p140, %p141
      %p143 = pneg %p142
      // Predicated region
      $region9: #{tpu_custom_call.1} parent=5 // pred_check
        _
      $region10: #{tpu_custom_call.1} parent=5 // pred_check_branch
        %145 = sbr.rel (%p142) target = $region12
      $region11: #{tpu_custom_call.1} parent=5 // pred_region
        %s146 = ssub.s32 %s19, 1
        // Predicated region
        $region13: #{tpu_custom_call.1} parent=11 // pred_check
          %p147 = pneg %p80
        $region14: #{tpu_custom_call.1} parent=11 // pred_check_branch
          %149 = sbr.rel (%p147) target = $region16
        $region15: #{tpu_custom_call.1} parent=11 // pred_region
          _
        $region16: #{tpu_custom_call.1} parent=11 // pred_fallthru
          _
      $region12: #{tpu_custom_call.1} parent=5 // pred_fallthru
        _
      %p150 = scmp.lt.s32.totalorder %s19, 2
      // Predicated region
      $region17: #{tpu_custom_call.1} parent=5 // pred_check
        %p151 = pneg %p150
      $region18: #{tpu_custom_call.1} parent=5 // pred_check_branch
        %153 = sbr.rel (%p151) target = $region20
      $region19: #{tpu_custom_call.1} parent=5 // pred_region
        // Predicated region
        $region21: #{tpu_custom_call.1} parent=19 // pred_check
          %p154 = pneg %p53
        $region22: #{tpu_custom_call.1} parent=19 // pred_check_branch
          %156 = sbr.rel (%p154) target = $region24
        $region23: #{tpu_custom_call.1} parent=19 // pred_region
          %s157 = sand.u32 %s43, 1
          %s158 = scalar_lea.sflag [#allocation3], %s157
          %s159 = sand.u32 %s43, 1
          %s160 = smul.addr %s159, 256
          %s161 = scalar_lea.vmem [#allocation2], %s160
          %s162 = smul.u32 32, %s27
          %s164 = ssub.s32 4096, 4096
          %165 = vsyncadd %s158, %s164
          %s166 = smul.addr %s26, 32
          %s167 = sadd.s32 %s162, %s166
          %s168 = smul.addr %s167, 128
          %s169 = scalar_lea.hbm %s0, %s168
          %s170 = sshll.u32 %s161, 4
          %s171 = int_to_ptr.vmem [resolvable:$true] %s170
          %176 = dma.hbm_to_vmem [thread:$0]  %s169, 4096, %s171, %s158, 128, 128, 8
        $region24: #{tpu_custom_call.1} parent=19 // pred_fallthru
          _
      $region20: #{tpu_custom_call.1} parent=5 // pred_fallthru
        _
      %p177 = scmp.le.s32.totalorder 1, %s19
      %p178 = scmp.lt.s32.totalorder %s19, 3
      %p179 = pnand %p177, %p178
      %p180 = pneg %p179
      // Predicated region
      $region25: #{tpu_custom_call.1} parent=5 // pred_check
        _
      $region26: #{tpu_custom_call.1} parent=5 // pred_check_branch
        %182 = sbr.rel (%p179) target = $region28
      $region27: #{tpu_custom_call.1} parent=5 // pred_region
        %s183 = ssub.s32 %s19, 1
        %s184 = sand.u32 %s46, 1
        %s185 = scalar_lea.sflag [#allocation3], %s184
        %s186 = sand.u32 %s46, 1
        %s187 = smul.addr %s186, 256
        %s188 = scalar_lea.vmem [#allocation2], %s187
        // Predicated region
        $region29: #{tpu_custom_call.1} parent=27 // pred_check
          %p189 = pneg %p59
        $region30: #{tpu_custom_call.1} parent=27 // pred_check_branch
          %191 = sbr.rel (%p189) target = $region32
        $region31: #{tpu_custom_call.1} parent=27 // pred_region
          %192 = dma.done %s185, 4096
        $region32: #{tpu_custom_call.1} parent=27 // pred_fallthru
          _
        %s193 = sand.u32 %s46, 1
        %s194 = scalar_lea.sflag [#allocation3], %s193
        %s195 = sand.u32 %s46, 1
        %s196 = smul.addr %s195, 256
        %s197 = scalar_lea.vmem [#allocation2], %s196
        %p198 = pneg %p59
        %p199 = pneg %p56
        %p200 = pneg %p80
        %p201 = pneg %p77
        %p202 = pneg %p106
        %p203 = pneg %p103
        %s204 = sand.u32 %s93, 1
        %s205 = scalar_lea.sflag [#allocation4], %s204
        %s206 = sand.u32 %s93, 1
        %s207 = scalar_lea.vmem [#allocation5], %s206
        %p208 = pneg %p132
        %p209 = pneg %p129
        %s210 = sand.u32 %s119, 1
        %s211 = scalar_lea.sflag [#allocation7], %s210
        %s212 = sand.u32 %s119, 1
        %s213 = scalar_lea.vmem [#allocation6], %s212
        %s214 = smul.u32 32, %s29
        %p215 = scmp.eq.s32.totalorder %s29, 0
        // Predicated region
        $region33: #{tpu_custom_call.1} parent=27 // pred_check
          %p216 = pneg %p215
        $region34: #{tpu_custom_call.1} parent=27 // pred_check_branch
          %218 = sbr.rel (%p216) target = $region36
        $region35: #{tpu_custom_call.1} parent=27 // pred_region
          %vm219 = vcmask 253952
          %220 = vst.msk [vmem:[%s207] sm:$0x1] %vm219, 0.0
          %221 = vst.msk [vmem:[%s213] sm:$0x1] %vm219, 0.0
        $region36: #{tpu_custom_call.1} parent=27 // pred_fallthru
          _
        %v222 = vld [vmem:[%s188] sm:$0xff]
        %v223 = vld [vmem:[%s188 + $0x8] sm:$0xff]
        %v224 = vld [vmem:[%s188 + $0x10] sm:$0xff]
        %v225 = vld [vmem:[%s188 + $0x18] sm:$0xff]
        %v226 = vld [vmem:[%s188 + $0x20] sm:$0xff]
        %v227 = vld [vmem:[%s188 + $0x28] sm:$0xff]
        %v228 = vld [vmem:[%s188 + $0x30] sm:$0xff]
        %v229 = vld [vmem:[%s188 + $0x38] sm:$0xff]
        %v230 = vld [vmem:[%s188 + $0x40] sm:$0xff]
        %v231 = vld [vmem:[%s188 + $0x48] sm:$0xff]
        %v232 = vld [vmem:[%s188 + $0x50] sm:$0xff]
        %v233 = vld [vmem:[%s188 + $0x58] sm:$0xff]
        %v234 = vld [vmem:[%s188 + $0x60] sm:$0xff]
        %v235 = vld [vmem:[%s188 + $0x68] sm:$0xff]
        %v236 = vld [vmem:[%s188 + $0x70] sm:$0xff]
        %v237 = vld [vmem:[%s188 + $0x78] sm:$0xff]
        %v238 = vld [vmem:[%s188 + $0x80] sm:$0xff]
        %v239 = vld [vmem:[%s188 + $0x88] sm:$0xff]
        %v240 = vld [vmem:[%s188 + $0x90] sm:$0xff]
        %v241 = vld [vmem:[%s188 + $0x98] sm:$0xff]
        %v242 = vld [vmem:[%s188 + $0xa0] sm:$0xff]
        %v243 = vld [vmem:[%s188 + $0xa8] sm:$0xff]
        %v244 = vld [vmem:[%s188 + $0xb0] sm:$0xff]
        %v245 = vld [vmem:[%s188 + $0xb8] sm:$0xff]
        %v246 = vld [vmem:[%s188 + $0xc0] sm:$0xff]
        %v247 = vld [vmem:[%s188 + $0xc8] sm:$0xff]
        %v248 = vld [vmem:[%s188 + $0xd0] sm:$0xff]
        %v249 = vld [vmem:[%s188 + $0xd8] sm:$0xff]
        %v250 = vld [vmem:[%s188 + $0xe0] sm:$0xff]
        %v251 = vld [vmem:[%s188 + $0xe8] sm:$0xff]
        %v252 = vld [vmem:[%s188 + $0xf0] sm:$0xff]
        %v253 = vld [vmem:[%s188 + $0xf8] sm:$0xff]
        %v254 = vld [vmem:[%s1] sm:$0xff]
        %v255 = vld [vmem:[%s1 + $0x8] sm:$0xff]
        %v256 = vld [vmem:[%s1 + $0x10] sm:$0xff]
        %v257 = vld [vmem:[%s1 + $0x18] sm:$0xff]
        %v258 = vld [vmem:[%s1 + $0x20] sm:$0xff]
        %v259 = vld [vmem:[%s1 + $0x28] sm:$0xff]
        %v260 = vld [vmem:[%s1 + $0x30] sm:$0xff]
        %v261 = vld [vmem:[%s1 + $0x38] sm:$0xff]
        %v262 = vld [vmem:[%s1 + $0x40] sm:$0xff]
        %v263 = vld [vmem:[%s1 + $0x48] sm:$0xff]
        %v264 = vld [vmem:[%s1 + $0x50] sm:$0xff]
        %v265 = vld [vmem:[%s1 + $0x58] sm:$0xff]
        %v266 = vld [vmem:[%s1 + $0x60] sm:$0xff]
        %v267 = vld [vmem:[%s1 + $0x68] sm:$0xff]
        %v268 = vld [vmem:[%s1 + $0x70] sm:$0xff]
        %v269 = vld [vmem:[%s1 + $0x78] sm:$0xff]
        %v270 = vld [vmem:[%s207] sm:$0x1]
        %v271 = vadd.f32 %v222, %v223
        %v272 = vadd.f32 %v271, %v224
        %v273 = vadd.f32 %v272, %v225
        %v274 = vadd.f32 %v273, %v226
        %v275 = vadd.f32 %v274, %v227
        %v276 = vadd.f32 %v275, %v228
        %v277 = vadd.f32 %v276, %v229
        %v278 = vadd.f32 %v277, %v230
        %v279 = vadd.f32 %v278, %v231
        %v280 = vadd.f32 %v279, %v232
        %v281 = vadd.f32 %v280, %v233
        %v282 = vadd.f32 %v281, %v234
        %v283 = vadd.f32 %v282, %v235
        %v284 = vadd.f32 %v283, %v236
        %v285 = vadd.f32 %v284, %v237
        %v286 = vadd.f32 %v285, %v238
        %v287 = vadd.f32 %v286, %v239
        %v288 = vadd.f32 %v287, %v240
        %v289 = vadd.f32 %v288, %v241
        %v290 = vadd.f32 %v289, %v242
        %v291 = vadd.f32 %v290, %v243
        %v292 = vadd.f32 %v291, %v244
        %v293 = vadd.f32 %v292, %v245
        %v294 = vadd.f32 %v293, %v246
        %v295 = vadd.f32 %v294, %v247
        %v296 = vadd.f32 %v295, %v248
        %v297 = vadd.f32 %v296, %v249
        %v298 = vadd.f32 %v297, %v250
        %v299 = vadd.f32 %v298, %v251
        %v300 = vadd.f32 %v299, %v252
        %v301 = vadd.f32 %v300, %v253
        %v302 = vrot.slane %v301, 4
        %v303 = vadd.f32 %v301, %v302
        %v304 = vrot.slane %v303, 2
        %v305 = vadd.f32 %v303, %v304
        %v306 = vrot.slane %v305, 1
        %v307 = vadd.f32 %v305, %v306
        %308 = vmatprep.subr.mxu0 0.0
        %309 = vmatpush1.msra.mxu0 %v269
        %310 = vmatprep.subr.mxu0 0.0
        %311 = vmatpush1.msra.mxu0 %v268
        %312 = vmatprep.subr.mxu0 0.0
        %313 = vmatpush1.msra.mxu0 %v267
        %314 = vmatprep.subr.mxu0 0.0
        %315 = vmatpush1.msra.mxu0 %v266
        %316 = vmatprep.subr.mxu0 0.0
        %317 = vmatpush1.msra.mxu0 %v265
        %318 = vmatprep.subr.mxu0 0.0
        %319 = vmatpush1.msra.mxu0 %v264
        %320 = vmatprep.subr.mxu0 0.0
        %321 = vmatpush1.msra.mxu0 %v263
        %322 = vmatprep.subr.mxu0 0.0
        %323 = vmatpush1.msra.mxu0 %v262
        %324 = vmatprep.subr.mxu0 0.0
        %325 = vmatpush1.msra.mxu0 %v261
        %326 = vmatprep.subr.mxu0 0.0
        %327 = vmatpush1.msra.mxu0 %v260
        %328 = vmatprep.subr.mxu0 0.0
        %329 = vmatpush1.msra.mxu0 %v259
        %330 = vmatprep.subr.mxu0 0.0
        %331 = vmatpush1.msra.mxu0 %v258
        %332 = vmatprep.subr.mxu0 0.0
        %333 = vmatpush1.msra.mxu0 %v257
        %334 = vmatprep.subr.mxu0 0.0
        %335 = vmatpush1.msra.mxu0 %v256
        %336 = vmatprep.subr.mxu0 0.0
        %337 = vmatpush1.msra.mxu0 %v255
        %338 = vmatprep.subr.mxu0 0.0
        %339 = vmatpush1.msra.mxu0 %v254
        %340 = vmatprep.subr.mxu0 0.0
        %341 = vmatpush2.msra.mxu0 0.0
        %342 = vmatprep.subr.mxu0 0.0
        %343 = vmatpush2.msra.mxu0 0.0
        %344 = vmatprep.subr.mxu0 0.0
        %345 = vmatpush2.msra.mxu0 0.0
        %346 = vmatprep.subr.mxu0 0.0
        %347 = vmatpush2.msra.mxu0 0.0
        %348 = vmatprep.subr.mxu0 0.0
        %349 = vmatpush2.msra.mxu0 0.0
        %350 = vmatprep.subr.mxu0 0.0
        %351 = vmatpush2.msra.mxu0 0.0
        %352 = vmatprep.subr.mxu0 0.0
        %353 = vmatpush2.msra.mxu0 0.0
        %354 = vmatprep.subr.mxu0 0.0
        %355 = vmatpush2.msra.mxu0 0.0
        %356 = vmatprep.subr.mxu0 0.0
        %357 = vmatpush2.msra.mxu0 0.0
        %358 = vmatprep.subr.mxu0 0.0
        %359 = vmatpush2.msra.mxu0 0.0
        %360 = vmatprep.subr.mxu0 0.0
        %361 = vmatpush2.msra.mxu0 0.0
        %362 = vmatprep.subr.mxu0 0.0
        %363 = vmatpush2.msra.mxu0 0.0
        %364 = vmatprep.subr.mxu0 0.0
        %365 = vmatpush2.msra.mxu0 0.0
        %366 = vmatprep.subr.mxu0 0.0
        %367 = vmatpush2.msra.mxu0 0.0
        %368 = vmatprep.subr.mxu0 0.0
        %369 = vmatpush2.msra.mxu0 0.0
        %370 = vmatprep.subr.mxu0 0.0
        %371 = vmatpush2.msra.mxu0 0.0
        %372 = vmatprep.mubr.f32.mxu0 0.0
        %373 = vmatmul.mubr.f32.gmra.mxu0 %v307
        %v374 = vpop.f32.mrf.mxu0
        %v375 = vadd.f32 0.0, %v374
        %v376 = vpop.f32.mrf.mxu0
        %377 = vdwg.mxu0
        %v378 = vadd.f32 %v270, %v375
        %vm379 = vcmask 253952
        %380 = vst.msk [vmem:[%s207] sm:$0x1] %vm379, %v378
        %v381 = vld [vmem:[%s213] sm:$0x1]
        %v382 = vmul.f32 %v222, %v222
        %v383 = vmul.f32 %v223, %v223
        %v384 = vmul.f32 %v224, %v224
        %v385 = vmul.f32 %v225, %v225
        %v386 = vmul.f32 %v226, %v226
        %v387 = vmul.f32 %v227, %v227
        %v388 = vmul.f32 %v228, %v228
        %v389 = vmul.f32 %v229, %v229
        %v390 = vmul.f32 %v230, %v230
        %v391 = vmul.f32 %v231, %v231
        %v392 = vmul.f32 %v232, %v232
        %v393 = vmul.f32 %v233, %v233
        %v394 = vmul.f32 %v234, %v234
        %v395 = vmul.f32 %v235, %v235
        %v396 = vmul.f32 %v236, %v236
        %v397 = vmul.f32 %v237, %v237
        %v398 = vmul.f32 %v238, %v238
        %v399 = vmul.f32 %v239, %v239
        %v400 = vmul.f32 %v240, %v240
        %v401 = vmul.f32 %v241, %v241
        %v402 = vmul.f32 %v242, %v242
        %v403 = vmul.f32 %v243, %v243
        %v404 = vmul.f32 %v244, %v244
        %v405 = vmul.f32 %v245, %v245
        %v406 = vmul.f32 %v246, %v246
        %v407 = vmul.f32 %v247, %v247
        %v408 = vmul.f32 %v248, %v248
        %v409 = vmul.f32 %v249, %v249
        %v410 = vmul.f32 %v250, %v250
        %v411 = vmul.f32 %v251, %v251
        %v412 = vmul.f32 %v252, %v252
        %v413 = vmul.f32 %v253, %v253
        %v414 = vadd.f32 %v382, %v383
        %v415 = vadd.f32 %v414, %v384
        %v416 = vadd.f32 %v415, %v385
        %v417 = vadd.f32 %v416, %v386
        %v418 = vadd.f32 %v417, %v387
        %v419 = vadd.f32 %v418, %v388
        %v420 = vadd.f32 %v419, %v389
        %v421 = vadd.f32 %v420, %v390
        %v422 = vadd.f32 %v421, %v391
        %v423 = vadd.f32 %v422, %v392
        %v424 = vadd.f32 %v423, %v393
        %v425 = vadd.f32 %v424, %v394
        %v426 = vadd.f32 %v425, %v395
        %v427 = vadd.f32 %v426, %v396
        %v428 = vadd.f32 %v427, %v397
        %v429 = vadd.f32 %v428, %v398
        %v430 = vadd.f32 %v429, %v399
        %v431 = vadd.f32 %v430, %v400
        %v432 = vadd.f32 %v431, %v401
        %v433 = vadd.f32 %v432, %v402
        %v434 = vadd.f32 %v433, %v403
        %v435 = vadd.f32 %v434, %v404
        %v436 = vadd.f32 %v435, %v405
        %v437 = vadd.f32 %v436, %v406
        %v438 = vadd.f32 %v437, %v407
        %v439 = vadd.f32 %v438, %v408
        %v440 = vadd.f32 %v439, %v409
        %v441 = vadd.f32 %v440, %v410
        %v442 = vadd.f32 %v441, %v411
        %v443 = vadd.f32 %v442, %v412
        %v444 = vadd.f32 %v443, %v413
        %v445 = vrot.slane %v444, 4
        %v446 = vadd.f32 %v444, %v445
        %v447 = vrot.slane %v446, 2
        %v448 = vadd.f32 %v446, %v447
        %v449 = vrot.slane %v448, 1
        %v450 = vadd.f32 %v448, %v449
        %451 = vmatprep.subr.mxu0 0.0
        %452 = vmatpush1.msra.mxu0 %v269
        %453 = vmatprep.subr.mxu0 0.0
        %454 = vmatpush1.msra.mxu0 %v268
        %455 = vmatprep.subr.mxu0 0.0
        %456 = vmatpush1.msra.mxu0 %v267
        %457 = vmatprep.subr.mxu0 0.0
        %458 = vmatpush1.msra.mxu0 %v266
        %459 = vmatprep.subr.mxu0 0.0
        %460 = vmatpush1.msra.mxu0 %v265
        %461 = vmatprep.subr.mxu0 0.0
        %462 = vmatpush1.msra.mxu0 %v264
        %463 = vmatprep.subr.mxu0 0.0
        %464 = vmatpush1.msra.mxu0 %v263
        %465 = vmatprep.subr.mxu0 0.0
        %466 = vmatpush1.msra.mxu0 %v262
        %467 = vmatprep.subr.mxu0 0.0
        %468 = vmatpush1.msra.mxu0 %v261
        %469 = vmatprep.subr.mxu0 0.0
        %470 = vmatpush1.msra.mxu0 %v260
        %471 = vmatprep.subr.mxu0 0.0
        %472 = vmatpush1.msra.mxu0 %v259
        %473 = vmatprep.subr.mxu0 0.0
        %474 = vmatpush1.msra.mxu0 %v258
        %475 = vmatprep.subr.mxu0 0.0
        %476 = vmatpush1.msra.mxu0 %v257
        %477 = vmatprep.subr.mxu0 0.0
        %478 = vmatpush1.msra.mxu0 %v256
        %479 = vmatprep.subr.mxu0 0.0
        %480 = vmatpush1.msra.mxu0 %v255
        %481 = vmatprep.subr.mxu0 0.0
        %482 = vmatpush1.msra.mxu0 %v254
        %483 = vmatprep.subr.mxu0 0.0
        %484 = vmatpush2.msra.mxu0 0.0
        %485 = vmatprep.subr.mxu0 0.0
        %486 = vmatpush2.msra.mxu0 0.0
        %487 = vmatprep.subr.mxu0 0.0
        %488 = vmatpush2.msra.mxu0 0.0
        %489 = vmatprep.subr.mxu0 0.0
        %490 = vmatpush2.msra.mxu0 0.0
        %491 = vmatprep.subr.mxu0 0.0
        %492 = vmatpush2.msra.mxu0 0.0
        %493 = vmatprep.subr.mxu0 0.0
        %494 = vmatpush2.msra.mxu0 0.0
        %495 = vmatprep.subr.mxu0 0.0
        %496 = vmatpush2.msra.mxu0 0.0
        %497 = vmatprep.subr.mxu0 0.0
        %498 = vmatpush2.msra.mxu0 0.0
        %499 = vmatprep.subr.mxu0 0.0
        %500 = vmatpush2.msra.mxu0 0.0
        %501 = vmatprep.subr.mxu0 0.0
        %502 = vmatpush2.msra.mxu0 0.0
        %503 = vmatprep.subr.mxu0 0.0
        %504 = vmatpush2.msra.mxu0 0.0
        %505 = vmatprep.subr.mxu0 0.0
        %506 = vmatpush2.msra.mxu0 0.0
        %507 = vmatprep.subr.mxu0 0.0
        %508 = vmatpush2.msra.mxu0 0.0
        %509 = vmatprep.subr.mxu0 0.0
        %510 = vmatpush2.msra.mxu0 0.0
        %511 = vmatprep.subr.mxu0 0.0
        %512 = vmatpush2.msra.mxu0 0.0
        %513 = vmatprep.subr.mxu0 0.0
        %514 = vmatpush2.msra.mxu0 0.0
        %515 = vmatprep.mubr.f32.mxu0 0.0
        %516 = vmatmul.mubr.f32.gmra.mxu0 %v450
        %v517 = vpop.f32.mrf.mxu0
        %v518 = vadd.f32 0.0, %v517
        %v519 = vpop.f32.mrf.mxu0
        %520 = vdwg.mxu0
        %v521 = vadd.f32 %v381, %v518
        %522 = vst.msk [vmem:[%s213] sm:$0x1] %vm379, %v521
        %s523 = sand.u32 %s93, 1
        %s524 = scalar_lea.sflag [#allocation4], %s523
        %s525 = sand.u32 %s93, 1
        %s526 = scalar_lea.vmem [#allocation5], %s525
        %s527 = sand.u32 %s119, 1
        %s528 = scalar_lea.sflag [#allocation7], %s527
        %s529 = sand.u32 %s119, 1
        %s530 = scalar_lea.vmem [#allocation6], %s529
        // Predicated region
        $region37: #{tpu_custom_call.1} parent=27 // pred_check
          %p531 = pneg %p103
        $region38: #{tpu_custom_call.1} parent=27 // pred_check_branch
          %533 = sbr.rel (%p531) target = $region40
        $region39: #{tpu_custom_call.1} parent=27 // pred_region
          %s535 = ssub.s32 16, 16
          %536 = vsyncadd %s524, %s535
          %s537 = smul.addr %s28, 16
          %s538 = scalar_lea.hbm %s2, %s537
          %s540 = sshll.u32 %s526, 4
          %s541 = int_to_ptr.vmem [resolvable:$true] %s540
          %543 = dma.vmem_to_hbm [thread:$0]  %s541, 16, %s538, %s524
        $region40: #{tpu_custom_call.1} parent=27 // pred_fallthru
          _
        // Predicated region
        $region41: #{tpu_custom_call.1} parent=27 // pred_check
          %p544 = pneg %p129
        $region42: #{tpu_custom_call.1} parent=27 // pred_check_branch
          %546 = sbr.rel (%p544) target = $region44
        $region43: #{tpu_custom_call.1} parent=27 // pred_region
          %s548 = ssub.s32 16, 16
          %549 = vsyncadd %s528, %s548
          %s550 = smul.addr %s28, 16
          %s551 = scalar_lea.hbm %s3, %s550
          %s553 = sshll.u32 %s530, 4
          %s554 = int_to_ptr.vmem [resolvable:$true] %s553
          %556 = dma.vmem_to_hbm [thread:$0]  %s554, 16, %s551, %s528
        $region44: #{tpu_custom_call.1} parent=27 // pred_fallthru
          _
      $region28: #{tpu_custom_call.1} parent=5 // pred_fallthru
        _
      %p557 = scmp.le.s32.totalorder 2, %s19
      // Predicated region
      $region45: #{tpu_custom_call.1} parent=5 // pred_check
        %p558 = pneg %p557
      $region46: #{tpu_custom_call.1} parent=5 // pred_check_branch
        %560 = sbr.rel (%p558) target = $region48
      $region47: #{tpu_custom_call.1} parent=5 // pred_region
        %s561 = ssub.s32 %s19, 2
        // Predicated region
        $region49: #{tpu_custom_call.1} parent=47 // pred_check
          %p562 = pneg %p109
        $region50: #{tpu_custom_call.1} parent=47 // pred_check_branch
          %564 = sbr.rel (%p562) target = $region52
        $region51: #{tpu_custom_call.1} parent=47 // pred_region
          %s565 = sand.u32 %s94, 1
          %s566 = scalar_lea.sflag [#allocation4], %s565
          %s567 = sand.u32 %s94, 1
          %s568 = scalar_lea.vmem [#allocation5], %s567
          %569 = dma.done %s566, 16
        $region52: #{tpu_custom_call.1} parent=47 // pred_fallthru
          _
        // Predicated region
        $region53: #{tpu_custom_call.1} parent=47 // pred_check
          %p570 = pneg %p135
        $region54: #{tpu_custom_call.1} parent=47 // pred_check_branch
          %572 = sbr.rel (%p570) target = $region56
        $region55: #{tpu_custom_call.1} parent=47 // pred_region
          %s573 = sand.u32 %s120, 1
          %s574 = scalar_lea.sflag [#allocation7], %s573
          %s575 = sand.u32 %s120, 1
          %s576 = scalar_lea.vmem [#allocation6], %s575
          %577 = dma.done %s574, 16
        $region56: #{tpu_custom_call.1} parent=47 // pred_fallthru
          _
      $region48: #{tpu_custom_call.1} parent=5 // pred_fallthru
        _
    $region6: #{tpu_custom_call.1} parent=1 // loop_footer
      %s23 = sadd.s32 1, %s19
    $region7: #{tpu_custom_call.1} parent=1 // loop_footer_branch
      %18 = sbr.rel target = $region3
    $region8: #{tpu_custom_call.1} parent=1 // loop_exit
      _
    %578 = vsyncpa [#allocation3], 1
    %s579 = scalar_lea.sflag [#allocation3], 1
    %580 = vsyncpa %s579, 1
    %581 = vsyncpa [#allocation4], 1
    %s582 = scalar_lea.sflag [#allocation4], 1
    %583 = vsyncpa %s582, 1
    %584 = vsyncpa [#allocation7], 1
    %s585 = scalar_lea.sflag [#allocation7], 1
    %586 = vsyncpa %s585, 1

</llo_original>
